<compile_context>
chip_gen: v7x
topology: tpu7x:2x2x1
jax: 0.10.0
libtpu: 0.0.40
codegen_flags: <defaults>
</compile_context>

<pallas_src>
import jax
import jax.numpy as jnp
from jax import lax
from jax.experimental import pallas as pl
from jax.experimental.pallas import tpu as pltpu

IN_FEATURES = 64
OUT_FEATURES = 3
PACK = 2                                  # rows packed per 128-lane row
PACKED_FEATS = PACK * IN_FEATURES         # 128
PACKED_OUT = PACK * OUT_FEATURES          # 6

# Packed-row tile: 8192 packed rows = 16384 original rows.
# f32: 8192 * 128 * 4 B = 4 MiB input tile (8 MiB double-buffered),
# output tile 8 * 8192 * 4 B = 256 KiB padded.  Fits under every
# generation's scoped-VMEM default while amortizing per-step overhead.
TMP_DEFAULT = 8192


def _round_up(v, n):
    return ((v + n - 1) // n) * n


def _linear_kernel(x_ref, w_ref, b_ref, o_ref):
    # x_ref: [TMP, 128]  (two original rows packed per 128-lane row)
    # w_ref: [6, 128]    (block-diagonal [[W, 0], [0, W]])
    # b_ref: [6, 1]      (bias repeated twice, f32)
    # o_ref: [6, TMP]    (lane-dense transposed result)
    acc = lax.dot_general(
        w_ref[...],
        x_ref[...],
        dimension_numbers=(((1,), (1,)), ((), ())),   # contract the 128 dim
        preferred_element_type=jnp.float32,
    )
    o_ref[...] = (acc + b_ref[...]).astype(o_ref.dtype)


def fs_forward(x, weight, bias):
    """Equivalent of FS().forward(x) = x @ weight.T + bias.

    x:      (..., 64) float (f32 or bf16 — bf16 halves HBM traffic)
    weight: (3, 64)         (PyTorch nn.Linear layout)
    bias:   (3,)
    returns (..., 3) in x.dtype
    """
    orig_shape = x.shape
    assert orig_shape[-1] == IN_FEATURES

    m = 1
    for d in orig_shape[:-1]:
        m *= d
    x2d = x.reshape(m, IN_FEATURES)

    # Pad row count to an even number so two rows pack into one 128-lane row.
    m_even = m + (m % PACK)
    if m_even != m:
        x2d = jnp.pad(x2d, ((0, m_even - m), (0, 0)))
    mp = m_even // PACK
    xp = x2d.reshape(mp, PACKED_FEATS)          # (mp, 128)

    # Block-diagonal weight [[W, 0], [0, W]] -> (6, 128), in x's dtype so the
    # MXU runs a homogeneous (bf16 or f32) dot with an f32 accumulator.
    w = weight.astype(x.dtype)
    z = jnp.zeros_like(w)
    w_bd = jnp.concatenate(
        [jnp.concatenate([w, z], axis=1),
         jnp.concatenate([z, w], axis=1)], axis=0)            # (6, 128)
    b_bd = jnp.concatenate([bias, bias]).reshape(PACKED_OUT, 1).astype(
        jnp.float32)                                           # (6, 1)

    # Tile selection:
    #  * tiny inputs: single full-extent tile (always a legal block shape).
    #  * otherwise: at least 2 tiles (so v7x megacore uses both TCs), tile a
    #    multiple of 128 (keeps both the (TMP,128) input block and the
    #    (6,TMP) lane-dense output block aligned), capped at TMP_DEFAULT.
    if mp <= 256:
        tmp = mp
    else:
        half = _round_up(pl.cdiv(mp, 2), 128)
        tmp = min(TMP_DEFAULT, half)
    grid = (pl.cdiv(mp, tmp),)

    # Explicit VMEM budget from the double-buffered tile sizes (+ headroom).
    itemsize = jnp.dtype(x.dtype).itemsize
    x_buf = _round_up(tmp, 8) * PACKED_FEATS * itemsize        # lane-dense, no pad waste
    o_buf = _round_up(PACKED_OUT, 8) * _round_up(tmp, 128) * itemsize
    w_buf = _round_up(PACKED_OUT, 8) * PACKED_FEATS * itemsize
    b_buf = 8 * 128 * 4
    vmem_limit = 2 * (x_buf + o_buf + w_buf + b_buf) + (2 << 20)
    vmem_limit = int(min(max(vmem_limit, 4 << 20), 32 << 20))

    cost = pl.CostEstimate(
        flops=2 * mp * PACKED_FEATS * PACKED_OUT,
        transcendentals=0,
        bytes_accessed=(mp * PACKED_FEATS * itemsize           # read x
                        + PACKED_OUT * mp * itemsize           # write out
                        + PACKED_OUT * PACKED_FEATS * itemsize  # weight
                        + PACKED_OUT * 4),                     # bias
    )

    out_packed = pl.pallas_call(
        _linear_kernel,
        out_shape=jax.ShapeDtypeStruct((PACKED_OUT, mp), x.dtype),
        grid=grid,
        in_specs=[
            pl.BlockSpec((tmp, PACKED_FEATS), lambda i: (i, 0)),
            pl.BlockSpec((PACKED_OUT, PACKED_FEATS), lambda i: (0, 0)),
            pl.BlockSpec((PACKED_OUT, 1), lambda i: (0, 0)),
        ],
        out_specs=pl.BlockSpec((PACKED_OUT, tmp), lambda i: (0, i)),
        compiler_params=pltpu.CompilerParams(
            dimension_semantics=("parallel",),   # independent row tiles
            vmem_limit_bytes=vmem_limit,
        ),
        cost_estimate=cost,
    )(xp, w_bd, b_bd)

    # Un-interleave the packed lane-dense result back to (..., 3).
    # out_packed[3*g + c, p] == W[c] . x[2p + g] + b[c]
    out = (out_packed.reshape(PACK, OUT_FEATURES, mp)
           .transpose(2, 0, 1)
           .reshape(m_even, OUT_FEATURES))[:m]
    return out.reshape(*orig_shape[:-1], OUT_FEATURES)


def init_params(key):
    """Deterministic init matching nn.Linear(64, 3) shapes."""
    kw, kb = jax.random.split(key)
    bound = 1.0 / (IN_FEATURES ** 0.5)
    weight = jax.random.uniform(
        kw, (OUT_FEATURES, IN_FEATURES), jnp.float32, -bound, bound)
    bias = jax.random.uniform(
        kb, (OUT_FEATURES,), jnp.float32, -bound, bound)
    return weight, bias


if __name__ == "__main__":
    key = jax.random.PRNGKey(0)
    k_x, k_p = jax.random.split(key)

    # Small example input: batch=2, seq=8, hidden=64 (hidden fixed by module).
    x = jax.random.normal(k_x, (2, 8, IN_FEATURES), jnp.float32)
    weight, bias = init_params(k_p)

    y = fs_forward(x, weight, bias)
    y = jax.block_until_ready(y)

    # Reference check against plain JAX.
    y_ref = x @ weight.T + bias
    assert y.shape == (2, 8, OUT_FEATURES)
    assert jnp.allclose(y, y_ref, atol=1e-5, rtol=1e-5)

    # Also exercise an odd row count / partial-tile path.
    x_odd = jax.random.normal(k_x, (5, IN_FEATURES), jnp.float32)
    y_odd = jax.block_until_ready(fs_forward(x_odd, weight, bias))
    assert jnp.allclose(y_odd, x_odd @ weight.T + bias, atol=1e-5, rtol=1e-5)

    print("KERNEL_OK")
</pallas_src>

<mosaic_0001>
module attributes {stable_mosaic.version = 11 : i64} {
  func.func @_linear_kernel(%arg0: i32, %arg1: memref<8x128xf32, #tpu.memory_space<vmem>>, %arg2: memref<6x128xf32, #tpu.memory_space<vmem>>, %arg3: memref<6x1xf32, #tpu.memory_space<vmem>>, %arg4: memref<6x8xf32, #tpu.memory_space<vmem>>) attributes {dimension_semantics = [#tpu.dimension_semantics<parallel>], iteration_bounds = array<i64: 1>, scalar_prefetch = 0 : i64, scratch_operands = 0 : i64, tpu.core_type = #tpu.core_type<tc>, window_params = [{transform_indices = @transform_0, window_bounds = array<i64: 8, 128>}, {pipeline_mode = #tpu.pipeline_mode<synchronous>, transform_indices = @transform_1, window_bounds = array<i64: 6, 128>}, {pipeline_mode = #tpu.pipeline_mode<synchronous>, transform_indices = @transform_2, window_bounds = array<i64: 6, 1>}, {transform_indices = @transform_3, window_bounds = array<i64: 6, 8>}]} {
    %c0 = arith.constant 0 : index
    %c0_0 = arith.constant 0 : index
    %0 = vector.load %arg2[%c0, %c0_0] : memref<6x128xf32, #tpu.memory_space<vmem>>, vector<6x128xf32>
    %c0_1 = arith.constant 0 : index
    %c0_2 = arith.constant 0 : index
    %1 = vector.load %arg1[%c0_1, %c0_2] : memref<8x128xf32, #tpu.memory_space<vmem>>, vector<8x128xf32>
    %cst = arith.constant dense<0.000000e+00> : vector<6x8xf32>
    %2 = tpu.matmul %0, %1, %cst {dimension_numbers = #tpu.dot_dimension_numbers<[1], [1], [0], [0], [0, 0, 1, 0], [], []>} : vector<6x128xf32>, vector<8x128xf32>, vector<6x8xf32> -> vector<6x8xf32>
    %c0_3 = arith.constant 0 : index
    %c0_4 = arith.constant 0 : index
    %3 = vector.load %arg3[%c0_3, %c0_4] : memref<6x1xf32, #tpu.memory_space<vmem>>, vector<6x1xf32>
    %4 = vector.broadcast %3 : vector<6x1xf32> to vector<6x8xf32>
    %5 = arith.addf %2, %4 : vector<6x8xf32>
    %c0_5 = arith.constant 0 : index
    %c0_6 = arith.constant 0 : index
    %6 = vector.load %arg4[%c0_5, %c0_6] : memref<6x8xf32, #tpu.memory_space<vmem>>, vector<6x8xf32>
    tpu.vector_store %arg4[%c0_5, %c0_6], %5 {strides = array<i32>} : memref<6x8xf32, #tpu.memory_space<vmem>>, vector<6x8xf32>,
    return
  }
  func.func @transform_0(%arg0: i32) -> (i32, i32) {
    %c0_i32 = arith.constant 0 : i32
    %c0_i32_0 = arith.constant 0 : i32
    return %arg0, %c0_i32 : i32, i32
  }
  func.func @transform_1(%arg0: i32) -> (i32, i32) {
    %c0_i32 = arith.constant 0 : i32
    %c0_i32_0 = arith.constant 0 : i32
    %c0_i32_1 = arith.constant 0 : i32
    return %c0_i32, %c0_i32_0 : i32, i32
  }
  func.func @transform_2(%arg0: i32) -> (i32, i32) {
    %c0_i32 = arith.constant 0 : i32
    %c0_i32_0 = arith.constant 0 : i32
    %c0_i32_1 = arith.constant 0 : i32
    return %c0_i32, %c0_i32_0 : i32, i32
  }
  func.func @transform_3(%arg0: i32) -> (i32, i32) {
    %c0_i32 = arith.constant 0 : i32
    %c0_i32_0 = arith.constant 0 : i32
    return %c0_i32, %arg0 : i32, i32
  }
}

</mosaic_0001>

<llo_original>
// kernel: tpu_custom_call.1
$region0: #{tpu_custom_call.1}
  #allocation0 [shape = 'u32[]', space=smem, size = 0x4, offset = 0x4, fixed_abs, tag = 'smem constant byte address 0x4 - core index']
  #allocation1 [shape = 'u32[144,128]{1,0:T(1,128)}', space=vmem, size = 0x12000, scoped, tag = 'internal scratch']
  %s0 = inlined_call_operand.vmem [shape: f32[8,128], index: 0, kind: input, shape index: {}]
  %s1 = inlined_call_operand.hbm [shape: f32[6,128], index: 1, kind: input, shape index: {}]
  %s2 = inlined_call_operand.vmem [shape: f32[6,1], index: 2, kind: input, shape index: {}]
  %s3 = inlined_call_operand.hbm [shape: f32[6,8], index: 3, kind: output, shape index: {}]
  %s4 = sld [smem:[#allocation0]]
  $region26: #{tpu_custom_call.1} parent=0
    _
  %s6 = ssub.s32 1, %s4
  %s7 = scalar_select 0, %s6, %s4
  $region1: #{tpu_custom_call.1} parent=0
    #allocation2 [shape = 'u8[4096]{0}', space=vmem, size = 0x1000, scoped, tag = 'input window, operand 1, single buffered']
    #allocation3 [shape = 's32[1]{0}', space=sflag, size = 0x4, scoped, tag = 'scoped memory for tpu_custom_call.1']
    #allocation4 [shape = 's32[1]{0}', space=sflag, size = 0x4, scoped, tag = 'scoped memory for tpu_custom_call.1']
    #allocation5 [shape = 'u8[4096]{0}', space=vmem, size = 0x1000, scoped, tag = 'output window, operand 0, single buffered']
    %8 = vsyncpa [#allocation3], 0
    %9 = vsyncpa [#allocation4], 0
    // Predicated region
    $region2: #{tpu_custom_call.1} parent=1 // pred_check
      _
    $region3: #{tpu_custom_call.1} parent=1 // pred_check_branch
      %11 = sbr.rel (0) target = $region5
    $region4: #{tpu_custom_call.1} parent=1 // pred_region
      _
    $region5: #{tpu_custom_call.1} parent=1 // pred_fallthru
      _
    // Predicated region
    $region6: #{tpu_custom_call.1} parent=1 // pred_check
      _
    $region7: #{tpu_custom_call.1} parent=1 // pred_check_branch
      %13 = sbr.rel (0) target = $region9
    $region8: #{tpu_custom_call.1} parent=1 // pred_region
      %s15 = ssub.s32 128, 128
      %16 = vsyncadd [#allocation3], %s15
      %s18 = sshll.u32 [#allocation2], 4
      %s19 = int_to_ptr.vmem [resolvable:$true] %s18
      %21 = dma.hbm_to_vmem [thread:$0]  %s1, 128, %s19, [#allocation3]
    $region9: #{tpu_custom_call.1} parent=1 // pred_fallthru
      _
    // Predicated region
    $region10: #{tpu_custom_call.1} parent=1 // pred_check
      _
    $region11: #{tpu_custom_call.1} parent=1 // pred_check_branch
      %23 = sbr.rel (0) target = $region13
    $region12: #{tpu_custom_call.1} parent=1 // pred_region
      _
    $region13: #{tpu_custom_call.1} parent=1 // pred_fallthru
      _
    // Predicated region
    $region14: #{tpu_custom_call.1} parent=1 // pred_check
      _
    $region15: #{tpu_custom_call.1} parent=1 // pred_check_branch
      %25 = sbr.rel (0) target = $region17
    $region16: #{tpu_custom_call.1} parent=1 // pred_region
      %26 = dma.done [#allocation3], 128
    $region17: #{tpu_custom_call.1} parent=1 // pred_fallthru
      _
    %v27 = vld [vmem:[#allocation2] sm:$0x3f]
    %v28 = vld [vmem:[%s0] sm:$0xff]
    %v29 = vld [vmem:[%s2] sm:$0x3f]
    %31 = vset.pattern.permute.xlu0 0
    %32 = vperm.xlu0 %31, %v29
    %v33 = vpop.permute.xlu0 %32
    %35 = vmatprep.subr.mxu0 0.0
    %36 = vmatpush1.xpose.msra.mxu0 %v28
    %37 = vmatprep.subr.mxu0 0.0
    %38 = vmatpush1.xpose.msra.mxu0 0.0
    %39 = vmatprep.subr.mxu0 0.0
    %40 = vmatpush1.xpose.msra.mxu0 0.0
    %41 = vmatprep.subr.mxu0 0.0
    %42 = vmatpush1.xpose.msra.mxu0 0.0
    %43 = vmatprep.subr.mxu0 0.0
    %44 = vmatpush1.xpose.msra.mxu0 0.0
    %45 = vmatprep.subr.mxu0 0.0
    %46 = vmatpush1.xpose.msra.mxu0 0.0
    %47 = vmatprep.subr.mxu0 0.0
    %48 = vmatpush1.xpose.msra.mxu0 0.0
    %49 = vmatprep.subr.mxu0 0.0
    %50 = vmatpush1.xpose.msra.mxu0 0.0
    %51 = vmatprep.subr.mxu0 0.0
    %52 = vmatpush1.xpose.msra.mxu0 0.0
    %53 = vmatprep.subr.mxu0 0.0
    %54 = vmatpush1.xpose.msra.mxu0 0.0
    %55 = vmatprep.subr.mxu0 0.0
    %56 = vmatpush1.xpose.msra.mxu0 0.0
    %57 = vmatprep.subr.mxu0 0.0
    %58 = vmatpush1.xpose.msra.mxu0 0.0
    %59 = vmatprep.subr.mxu0 0.0
    %60 = vmatpush1.xpose.msra.mxu0 0.0
    %61 = vmatprep.subr.mxu0 0.0
    %62 = vmatpush1.xpose.msra.mxu0 0.0
    %63 = vmatprep.subr.mxu0 0.0
    %64 = vmatpush1.xpose.msra.mxu0 0.0
    %65 = vmatprep.subr.mxu0 0.0
    %66 = vmatpush1.xpose.msra.mxu0 0.0
    %67 = vmatprep.subr.mxu0 0.0
    %68 = vmatpush1.xpose.msra.mxu0 0.0
    %69 = vmatprep.subr.mxu0 0.0
    %70 = vmatpush1.xpose.msra.mxu0 0.0
    %71 = vmatprep.subr.mxu0 0.0
    %72 = vmatpush1.xpose.msra.mxu0 0.0
    %73 = vmatprep.subr.mxu0 0.0
    %74 = vmatpush1.xpose.msra.mxu0 0.0
    %75 = vmatprep.subr.mxu0 0.0
    %76 = vmatpush1.xpose.msra.mxu0 0.0
    %77 = vmatprep.subr.mxu0 0.0
    %78 = vmatpush1.xpose.msra.mxu0 0.0
    %79 = vmatprep.subr.mxu0 0.0
    %80 = vmatpush1.xpose.msra.mxu0 0.0
    %81 = vmatprep.subr.mxu0 0.0
    %82 = vmatpush1.xpose.msra.mxu0 0.0
    %83 = vmatprep.subr.mxu0 0.0
    %84 = vmatpush1.xpose.msra.mxu0 0.0
    %85 = vmatprep.subr.mxu0 0.0
    %86 = vmatpush1.xpose.msra.mxu0 0.0
    %87 = vmatprep.subr.mxu0 0.0
    %88 = vmatpush1.xpose.msra.mxu0 0.0
    %89 = vmatprep.subr.mxu0 0.0
    %90 = vmatpush1.xpose.msra.mxu0 0.0
    %91 = vmatprep.subr.mxu0 0.0
    %92 = vmatpush1.xpose.msra.mxu0 0.0
    %93 = vmatprep.subr.mxu0 0.0
    %94 = vmatpush1.xpose.msra.mxu0 0.0
    %95 = vmatprep.subr.mxu0 0.0
    %96 = vmatpush1.xpose.msra.mxu0 0.0
    %97 = vmatprep.subr.mxu0 0.0
    %98 = vmatpush1.xpose.msra.mxu0 0.0
    %99 = vmatprep.mubr.f32.mxu0 0.0
    %100 = vmatmul.mubr.f32.gmra.mrb[0].mxu0 %v27
    %v101 = vpop.f32.mrb[0].mxu0
    %v102 = vadd.f32 %v33, %v101
    %v103 = vpop.f32.mrb[0].mxu0
    %104 = vdwg.mxu0
    %vm105 = vcmask 62464
    %106 = vst.msk [vmem:[#allocation5] sm:$0x3f] %vm105, %v102
    // Predicated region
    $region18: #{tpu_custom_call.1} parent=1 // pred_check
      _
    $region19: #{tpu_custom_call.1} parent=1 // pred_check_branch
      %108 = sbr.rel (0) target = $region21
    $region20: #{tpu_custom_call.1} parent=1 // pred_region
      %s110 = ssub.s32 128, 128
      %111 = vsyncadd [#allocation4], %s110
      %s113 = sshll.u32 [#allocation5], 4
      %s114 = int_to_ptr.vmem [resolvable:$true] %s113
      %116 = dma.vmem_to_hbm [thread:$0]  %s114, 128, %s3, [#allocation4]
    $region21: #{tpu_custom_call.1} parent=1 // pred_fallthru
      _
    // Predicated region
    $region22: #{tpu_custom_call.1} parent=1 // pred_check
      _
    $region23: #{tpu_custom_call.1} parent=1 // pred_check_branch
      %118 = sbr.rel (0) target = $region25
    $region24: #{tpu_custom_call.1} parent=1 // pred_region
      %119 = dma.done [#allocation4], 128
    $region25: #{tpu_custom_call.1} parent=1 // pred_fallthru
      _
    %120 = vsyncpa [#allocation3], 1
    %121 = vsyncpa [#allocation4], 1

</llo_original>
